<compile_context>
chip_gen: v6e
topology: v6e:2x2x1
jax: 0.10.0
libtpu: 0.0.40
codegen_flags: <defaults>
</compile_context>

<pallas_src>
import jax
import jax.numpy as jnp
from jax.experimental import pallas as pl
from jax.experimental.pallas import tpu as pltpu


# --------------------------------------------------------------------------- #
# Pallas kernel: pure DMA-engine HBM -> HBM copy (no VMEM staging, no grid).
# --------------------------------------------------------------------------- #
def _hbm_copy_kernel(x_hbm_ref, o_hbm_ref, sem):
    cp = pltpu.make_async_copy(x_hbm_ref, o_hbm_ref, sem)
    cp.start()
    cp.wait()


def _device_copy(x: jax.Array) -> jax.Array:
    """Identity pass-through of `x` driven entirely by the DMA engines."""
    nbytes = x.size * x.dtype.itemsize
    return pl.pallas_call(
        _hbm_copy_kernel,
        out_shape=jax.ShapeDtypeStruct(x.shape, x.dtype),
        in_specs=[pl.BlockSpec(memory_space=pl.ANY)],   # raw HBM ref, no auto-DMA
        out_specs=pl.BlockSpec(memory_space=pl.ANY),    # raw HBM ref, DMA target
        scratch_shapes=[pltpu.SemaphoreType.DMA],       # completion semaphore
        cost_estimate=pl.CostEstimate(
            flops=0, transcendentals=0, bytes_accessed=2 * nbytes),
    )(x)


# --------------------------------------------------------------------------- #
# JAX/Pallas mirror of nerv.training.model.BaseModel (abstract base class).
# --------------------------------------------------------------------------- #
class BaseModel:
    def __init__(self, exercise_kernel: bool = False):
        self.training = True              # mimics nn.Module.training default
        # Base-class forward is an identity; only route tensors through the
        # Pallas DMA kernel when explicitly asked (debug / data-path check).
        self.exercise_kernel = exercise_kernel

    # ---- forward / loss hooks (abstract in the reference module) ----------
    def forward(self, data_dict):
        # TODO(synk): base-class forward is `pass`; subclasses define compute.
        # Default: zero-cost identity (no kernel launch, no extra HBM traffic).
        if not self.exercise_kernel:
            return dict(data_dict)
        out_dict = {}
        for k, v in data_dict.items():
            out_dict[k] = _device_copy(v) if isinstance(v, jax.Array) else v
        return out_dict

    def calc_train_loss(self, data_dict, out_dict):
        # TODO(synk): abstract in the reference module (`pass`).
        return out_dict

    def calc_eval_loss(self, data_dict, out_dict):
        # @torch.no_grad() wrapper — in JAX this is just "don't differentiate".
        return self.calc_train_loss(data_dict, out_dict)

    def loss_function(self, data_dict):
        out_dict = self.forward(data_dict)
        if self.training:
            out_dict = self.calc_train_loss(data_dict, out_dict)
        else:
            out_dict = self.calc_eval_loss(data_dict, out_dict)
        for v in data_dict.values():
            if isinstance(v, jax.Array):
                out_dict['batch_size'] = v.shape[0]
                break
        return out_dict

    # ---- training lifecycle hooks (no-ops in the base class) --------------
    def _training_epoch_start(self, method=None):
        pass

    def _training_step_start(self, method=None):
        pass

    def _training_step_end(self, method=None):
        pass

    def _training_epoch_end(self, method=None):
        pass

    @property
    def dtype(self):
        return None  # TODO(synk): abstract in base class

    @property
    def device(self):
        return None  # TODO(synk): abstract in base class


if __name__ == "__main__":
    key = jax.random.PRNGKey(0)
    # NCHW input, consistent with PyTorch conv conventions of subclasses.
    x = jax.random.normal(key, (2, 4, 16, 16), dtype=jnp.float32)
    data_dict = {"img": x}

    # Default (production) path: identity forward, no kernel launch at all.
    fast = BaseModel()
    out_fast = fast.loss_function(data_dict)
    assert out_fast["img"] is x              # true alias, zero HBM traffic
    assert out_fast["batch_size"] == 2

    # Debug path: exercise the data path once through the Pallas DMA kernel.
    model = BaseModel(exercise_kernel=True)
    out_dict = model.loss_function(data_dict)
    y = jax.block_until_ready(out_dict["img"])

    assert y.shape == x.shape and y.dtype == x.dtype
    assert bool(jnp.all(y == x))             # identity pass-through exact
    assert out_dict["batch_size"] == 2       # batch_size wiring from loss_function

    print("KERNEL_OK")
</pallas_src>

<mosaic_0001>
module attributes {stable_mosaic.version = 11 : i64} {
  func.func @_hbm_copy_kernel(%arg0: memref<2x4x16x16xf32, #tpu.memory_space<any>>, %arg1: memref<2x4x16x16xf32, #tpu.memory_space<any>>, %arg2: memref<!tpu.dma_semaphore, #tpu.memory_space<semaphore_mem>>) attributes {dimension_semantics = [], scalar_prefetch = 0 : i64, scratch_operands = 1 : i64, tpu.core_type = #tpu.core_type<tc>} {
    tpu.enqueue_dma source(%arg0 : memref<2x4x16x16xf32, #tpu.memory_space<any>>) target(%arg1 : memref<2x4x16x16xf32, #tpu.memory_space<any>>) target_semaphore(%arg2 : memref<!tpu.dma_semaphore, #tpu.memory_space<semaphore_mem>>)
    tpu.wait_dma2 semaphore(%arg2 : memref<!tpu.dma_semaphore, #tpu.memory_space<semaphore_mem>>) src(%arg0 : memref<2x4x16x16xf32, #tpu.memory_space<any>>) dst(%arg1 : memref<2x4x16x16xf32, #tpu.memory_space<any>>)
    return
  }
}

</mosaic_0001>

<llo_original>
// kernel: tpu_custom_call.1
$region0: #{tpu_custom_call.1}
  #allocation0 [shape = 'u32[]', space=smem, size = 0x4, offset = 0x4, fixed_abs, tag = 'smem constant byte address 0x4 - core index']
  #allocation1 [shape = 'u32[144,128]{1,0:T(1,128)}', space=vmem, size = 0x12000, scoped, tag = 'internal scratch']
  #allocation2 [shape = 's32[1]{0}', space=sflag, size = 0x4, scoped, tag = 'scratch operand']
  #allocation3 [shape = 's32[]', space=sflag, size = 0x4, offset = 0, fixed_abs, tag = 'sflag constant byte address 0x0 - dummy sync flag']
  #allocation4 [shape = 'u32[0]{0}', space=smem, size = 0, offset = 0, fixed_abs, tag = 'smem constant byte address 0x0 - null']
  %s0 = inlined_call_operand.hbm [shape: f32[2,4,16,16], index: 0, kind: input, shape index: {}]
  %s1 = inlined_call_operand.hbm [shape: f32[2,4,16,16], index: 1, kind: output, shape index: {}]
  %s2 = sld [smem:[#allocation0]]
  $region2: #{tpu_custom_call.1} parent=0
    _
  %s4 = ssub.s32 1, %s2
  %s5 = scalar_select 0, %s4, %s2
  %s7 = sshll.u32 1, 14
  %s8 = sxor.u32 4294967295, %s7
  %12 = dma.general %s0, 2048, %s1, [#allocation2], 131072, [#allocation4], 0, 0
  %s13 = smul.u32 2, 4
  %s14 = smul.u32 %s13, 16
  %s15 = smul.u32 %s14, 1
  %s16 = sshll.u32 %s15, 4
  %17 = dma.done [#allocation2], %s16
  %18 = vsyncmov [#allocation2]
  %s19 = vpop.sfrf %18
  %p20 = scmp.eq.s32.totalorder %s19, 0
  %p21 = pneg %p20
  %23 = shalt.err (%p21)

</llo_original>
